<compile_context>
chip_gen: v7x
topology: tpu7x:2x2x1
jax: 0.10.0
libtpu: 0.0.40
codegen_flags: <defaults>
</compile_context>

<pallas_src>
import jax
import jax.numpy as jnp
from jax.experimental import pallas as pl
from jax.experimental.pallas import tpu as pltpu

IN_DIM = 4
HIDDEN = 128
N_ACT = 2


def _hidden(x_ref, p_ref):
    """relu(x @ W1 + b1) computed on the VPU (K=4 is far too small for MXU)."""
    x = x_ref[...]            # (B, 4)
    p = p_ref[...]            # (8, 128) packed parameter slab
    h = p[4:5, :]                                  # bias row, (1, 128)
    h = h + x[:, 0:1] * p[0:1, :]
    h = h + x[:, 1:2] * p[1:2, :]
    h = h + x[:, 2:3] * p[2:3, :]
    h = h + x[:, 3:4] * p[3:4, :]
    return jnp.maximum(h, 0.0), p                  # (B, 128), slab


def _policy_kernel(x_ref, p_ref, probs_ref, val_ref):
    h, p = _hidden(x_ref, p_ref)                   # (B, 128)
    # Fused heads on VPU + XLU lane-reduce (MXU not worth it at this size).
    d = jnp.sum(h * p[5:6, :], axis=-1, keepdims=True) + p[7:8, 0:1]   # (B, 1)
    v = jnp.sum(h * p[6:7, :], axis=-1, keepdims=True) + p[7:8, 1:2]   # (B, 1)
    # 2-class softmax closed form; sigmoid stays on the EUP slot.
    p1 = jax.nn.sigmoid(d)
    p0 = 1.0 - p1
    # Direct slice stores -- no lane concat shuffle, no wrapper slicing.
    probs_ref[:, 0:1] = p0
    probs_ref[:, 1:2] = p1
    val_ref[...] = v


def _value_kernel(x_ref, p_ref, val_ref):
    h, p = _hidden(x_ref, p_ref)                   # (B, 128)
    val_ref[...] = (
        jnp.sum(h * p[6:7, :], axis=-1, keepdims=True) + p[7:8, 1:2]
    )


_VMEM_SPEC = pl.BlockSpec(memory_space=pltpu.MemorySpace.VMEM)


def policy_forward(x, param_slab, only_value=False):
    """x: (B, 4) f32; param_slab: (8, 128) f32 from pack_params.

    Returns (softmax(action_scores), state_values), or just state_values
    when only_value=True (matching Policy.forward)."""
    B = x.shape[0]

    if only_value:
        return pl.pallas_call(
            _value_kernel,
            out_shape=jax.ShapeDtypeStruct((B, 1), jnp.float32),
            in_specs=[_VMEM_SPEC, _VMEM_SPEC],
            out_specs=_VMEM_SPEC,
        )(x, param_slab)

    probs, values = pl.pallas_call(
        _policy_kernel,
        out_shape=(
            jax.ShapeDtypeStruct((B, N_ACT), jnp.float32),
            jax.ShapeDtypeStruct((B, 1), jnp.float32),
        ),
        in_specs=[_VMEM_SPEC, _VMEM_SPEC],
        out_specs=(_VMEM_SPEC, _VMEM_SPEC),
    )(x, param_slab)
    return probs, values


def init_raw_params(key):
    """Parameters in the same shapes as the nn.Module, stored (in, out)."""
    k1, k2, k3, k4, k5, k6 = jax.random.split(key, 6)

    def lin(kw, kb, fan_in, fan_out):
        bound = 1.0 / jnp.sqrt(jnp.float32(fan_in))
        w = jax.random.uniform(kw, (fan_in, fan_out), jnp.float32, -bound, bound)
        b = jax.random.uniform(kb, (1, fan_out), jnp.float32, -bound, bound)
        return w, b

    w1, b1 = lin(k1, k2, IN_DIM, HIDDEN)
    wa, ba = lin(k3, k4, HIDDEN, N_ACT)
    wv, bv = lin(k5, k6, HIDDEN, 1)
    return (w1, b1, wa, ba, wv, bv)


def pack_params(w1, b1, wa, ba, wv, bv):
    """One-time host-side packing: 6 tensors -> a single (8, 128) slab.

    NOTE: weights here are stored (in_features, out_features).  A PyTorch
    nn.Linear.weight is (out_features, in_features); transpose (.T) each
    weight before calling this when importing a real checkpoint.
    """
    slab = jnp.zeros((8, HIDDEN), jnp.float32)
    slab = slab.at[0:4, :].set(w1)                        # W1
    slab = slab.at[4, :].set(b1[0])                       # b1
    slab = slab.at[5, :].set(wa[:, 1] - wa[:, 0])         # logit-diff weights
    slab = slab.at[6, :].set(wv[:, 0])                    # value weights
    slab = slab.at[7, 0].set(ba[0, 1] - ba[0, 0])         # logit-diff bias
    slab = slab.at[7, 1].set(bv[0, 0])                    # value bias
    return slab


if __name__ == "__main__":
    key = jax.random.PRNGKey(0)
    kx, kp = jax.random.split(key)
    B = 8
    x = jax.random.normal(kx, (B, IN_DIM), jnp.float32)

    raw = init_raw_params(kp)
    param_slab = pack_params(*raw)

    probs, values = jax.block_until_ready(policy_forward(x, param_slab))

    # Reference check in plain JAX against the unpacked parameters.
    w1, b1, wa, ba, wv, bv = raw
    h = jnp.maximum(x @ w1 + b1, 0.0)
    ref_probs = jax.nn.softmax(h @ wa + ba, axis=-1)
    ref_vals = h @ wv + bv
    assert probs.shape == (B, N_ACT) and values.shape == (B, 1)
    assert jnp.allclose(probs, ref_probs, atol=1e-5)
    assert jnp.allclose(values, ref_vals, atol=1e-5)

    # only_value path (softmax head and probs output fully elided).
    v_only = jax.block_until_ready(policy_forward(x, param_slab, only_value=True))
    assert v_only.shape == (B, 1)
    assert jnp.allclose(v_only, ref_vals, atol=1e-5)

    print("KERNEL_OK")
</pallas_src>

<mosaic_0001>
module attributes {stable_mosaic.version = 11 : i64} {
  func.func @_policy_kernel(%arg0: memref<8x4xf32, #tpu.memory_space<vmem>>, %arg1: memref<8x128xf32, #tpu.memory_space<vmem>>, %arg2: memref<8x2xf32, #tpu.memory_space<vmem>>, %arg3: memref<8x1xf32, #tpu.memory_space<vmem>>) attributes {dimension_semantics = [], scalar_prefetch = 0 : i64, scratch_operands = 0 : i64, tpu.core_type = #tpu.core_type<tc>} {
    %c0 = arith.constant 0 : index
    %c0_0 = arith.constant 0 : index
    %0 = vector.load %arg0[%c0, %c0_0] : memref<8x4xf32, #tpu.memory_space<vmem>>, vector<8x4xf32>
    %c0_1 = arith.constant 0 : index
    %c0_2 = arith.constant 0 : index
    %1 = vector.load %arg1[%c0_1, %c0_2] : memref<8x128xf32, #tpu.memory_space<vmem>>, vector<8x128xf32>
    %2 = vector.extract_strided_slice %1 {offsets = [4, 0], sizes = [1, 128], strides = [1, 1]} : vector<8x128xf32> to vector<1x128xf32>
    %3 = vector.extract_strided_slice %0 {offsets = [0, 0], sizes = [8, 1], strides = [1, 1]} : vector<8x4xf32> to vector<8x1xf32>
    %4 = vector.extract_strided_slice %1 {offsets = [0, 0], sizes = [1, 128], strides = [1, 1]} : vector<8x128xf32> to vector<1x128xf32>
    %5 = vector.broadcast %3 : vector<8x1xf32> to vector<8x128xf32>
    %6 = vector.broadcast %4 : vector<1x128xf32> to vector<8x128xf32>
    %7 = arith.mulf %5, %6 : vector<8x128xf32>
    %8 = vector.broadcast %2 : vector<1x128xf32> to vector<8x128xf32>
    %9 = arith.addf %8, %7 : vector<8x128xf32>
    %10 = vector.extract_strided_slice %0 {offsets = [0, 1], sizes = [8, 1], strides = [1, 1]} : vector<8x4xf32> to vector<8x1xf32>
    %11 = vector.extract_strided_slice %1 {offsets = [1, 0], sizes = [1, 128], strides = [1, 1]} : vector<8x128xf32> to vector<1x128xf32>
    %12 = vector.broadcast %10 : vector<8x1xf32> to vector<8x128xf32>
    %13 = vector.broadcast %11 : vector<1x128xf32> to vector<8x128xf32>
    %14 = arith.mulf %12, %13 : vector<8x128xf32>
    %15 = arith.addf %9, %14 : vector<8x128xf32>
    %16 = vector.extract_strided_slice %0 {offsets = [0, 2], sizes = [8, 1], strides = [1, 1]} : vector<8x4xf32> to vector<8x1xf32>
    %17 = vector.extract_strided_slice %1 {offsets = [2, 0], sizes = [1, 128], strides = [1, 1]} : vector<8x128xf32> to vector<1x128xf32>
    %18 = vector.broadcast %16 : vector<8x1xf32> to vector<8x128xf32>
    %19 = vector.broadcast %17 : vector<1x128xf32> to vector<8x128xf32>
    %20 = arith.mulf %18, %19 : vector<8x128xf32>
    %21 = arith.addf %15, %20 : vector<8x128xf32>
    %22 = vector.extract_strided_slice %0 {offsets = [0, 3], sizes = [8, 1], strides = [1, 1]} : vector<8x4xf32> to vector<8x1xf32>
    %23 = vector.extract_strided_slice %1 {offsets = [3, 0], sizes = [1, 128], strides = [1, 1]} : vector<8x128xf32> to vector<1x128xf32>
    %24 = vector.broadcast %22 : vector<8x1xf32> to vector<8x128xf32>
    %25 = vector.broadcast %23 : vector<1x128xf32> to vector<8x128xf32>
    %26 = arith.mulf %24, %25 : vector<8x128xf32>
    %27 = arith.addf %21, %26 : vector<8x128xf32>
    %cst = arith.constant 0.000000e+00 : f32
    %28 = vector.broadcast %cst : f32 to vector<8x128xf32>
    %29 = arith.maximumf %27, %28 : vector<8x128xf32>
    %30 = vector.extract_strided_slice %1 {offsets = [5, 0], sizes = [1, 128], strides = [1, 1]} : vector<8x128xf32> to vector<1x128xf32>
    %31 = vector.broadcast %30 : vector<1x128xf32> to vector<8x128xf32>
    %32 = arith.mulf %29, %31 : vector<8x128xf32>
    %cst_3 = arith.constant dense<0.000000e+00> : vector<8xf32>
    %33 = vector.multi_reduction <add>, %32, %cst_3 [1] : vector<8x128xf32> to vector<8xf32>
    %34 = vector.shape_cast %33 : vector<8xf32> to vector<8x1xf32>
    %35 = vector.extract_strided_slice %1 {offsets = [7, 0], sizes = [1, 1], strides = [1, 1]} : vector<8x128xf32> to vector<1x1xf32>
    %36 = vector.broadcast %35 : vector<1x1xf32> to vector<8x1xf32>
    %37 = arith.addf %34, %36 : vector<8x1xf32>
    %38 = vector.extract_strided_slice %1 {offsets = [6, 0], sizes = [1, 128], strides = [1, 1]} : vector<8x128xf32> to vector<1x128xf32>
    %39 = vector.broadcast %38 : vector<1x128xf32> to vector<8x128xf32>
    %40 = arith.mulf %29, %39 : vector<8x128xf32>
    %cst_4 = arith.constant dense<0.000000e+00> : vector<8xf32>
    %41 = vector.multi_reduction <add>, %40, %cst_4 [1] : vector<8x128xf32> to vector<8xf32>
    %42 = vector.shape_cast %41 : vector<8xf32> to vector<8x1xf32>
    %43 = vector.extract_strided_slice %1 {offsets = [7, 1], sizes = [1, 1], strides = [1, 1]} : vector<8x128xf32> to vector<1x1xf32>
    %44 = vector.broadcast %43 : vector<1x1xf32> to vector<8x1xf32>
    %45 = arith.addf %42, %44 : vector<8x1xf32>
    %46 = arith.negf %37 : vector<8x1xf32>
    %47 = math.exp %46 : vector<8x1xf32>
    %cst_5 = arith.constant 1.000000e+00 : f32
    %48 = vector.broadcast %cst_5 : f32 to vector<8x1xf32>
    %49 = arith.addf %48, %47 : vector<8x1xf32>
    %50 = arith.divf %48, %49 : vector<8x1xf32>
    %cst_6 = arith.constant 1.000000e+00 : f32
    %51 = vector.broadcast %cst_6 : f32 to vector<8x1xf32>
    %52 = arith.subf %51, %50 : vector<8x1xf32>
    %c0_7 = arith.constant 0 : index
    %c0_8 = arith.constant 0 : index
    %53 = vector.load %arg2[%c0_7, %c0_8] : memref<8x2xf32, #tpu.memory_space<vmem>>, vector<8x1xf32>
    tpu.vector_store %arg2[%c0_7, %c0_8], %52 {strides = array<i32>} : memref<8x2xf32, #tpu.memory_space<vmem>>, vector<8x1xf32>,
    %c0_9 = arith.constant 0 : index
    %c1 = arith.constant 1 : index
    %54 = vector.load %arg2[%c0_9, %c1] : memref<8x2xf32, #tpu.memory_space<vmem>>, vector<8x1xf32>
    tpu.vector_store %arg2[%c0_9, %c1], %50 {strides = array<i32>} : memref<8x2xf32, #tpu.memory_space<vmem>>, vector<8x1xf32>,
    %c0_10 = arith.constant 0 : index
    %c0_11 = arith.constant 0 : index
    %55 = vector.load %arg3[%c0_10, %c0_11] : memref<8x1xf32, #tpu.memory_space<vmem>>, vector<8x1xf32>
    tpu.vector_store %arg3[%c0_10, %c0_11], %45 {strides = array<i32>} : memref<8x1xf32, #tpu.memory_space<vmem>>, vector<8x1xf32>,
    return
  }
}

</mosaic_0001>

<llo_original>
// kernel: tpu_custom_call.1
$region0: #{tpu_custom_call.1}
  #allocation0 [shape = 'u32[]', space=smem, size = 0x4, offset = 0x4, fixed_abs, tag = 'smem constant byte address 0x4 - core index']
  #allocation1 [shape = 'u32[144,128]{1,0:T(1,128)}', space=vmem, size = 0x12000, scoped, tag = 'internal scratch']
  %s0 = inlined_call_operand.vmem [shape: f32[8,4], index: 0, kind: input, shape index: {}]
  %s1 = inlined_call_operand.vmem [shape: f32[8,128], index: 1, kind: input, shape index: {}]
  %s2 = inlined_call_operand.vmem [shape: f32[8,2], index: 2, kind: output, shape index: {0}]
  %s3 = inlined_call_operand.vmem [shape: f32[8,1], index: 3, kind: output, shape index: {1}]
  %4 = xla_tuple %s2, %s3
  %s5 = sld [smem:[#allocation0]]
  $region26: #{tpu_custom_call.1} parent=0
    _
  %s7 = ssub.s32 1, %s5
  %s8 = scalar_select 0, %s7, %s5
  // Predicated region
  $region2: #{tpu_custom_call.1} parent=0 // pred_check
    _
  $region3: #{tpu_custom_call.1} parent=0 // pred_check_branch
    %10 = sbr.rel (0) target = $region5
  $region4: #{tpu_custom_call.1} parent=0 // pred_region
    _
  $region5: #{tpu_custom_call.1} parent=0 // pred_fallthru
    _
  // Predicated region
  $region6: #{tpu_custom_call.1} parent=0 // pred_check
    _
  $region7: #{tpu_custom_call.1} parent=0 // pred_check_branch
    %12 = sbr.rel (0) target = $region9
  $region8: #{tpu_custom_call.1} parent=0 // pred_region
    _
  $region9: #{tpu_custom_call.1} parent=0 // pred_fallthru
    _
  %v13 = vld [vmem:[%s0] sm:$0xff]
  %v14 = vld [vmem:[%s1] sm:$0xff]
  %16 = vset.pattern.permute.xlu0 0
  %17 = vperm.xlu0 %16, %v13
  %v18 = vpop.permute.xlu0 %17
  %v20 = vlaneseq
  %v21 = vshrl.u32 %v20, 7
  %v22 = vsub.s32 0, %v21
  %v23 = vrot.slane %v14, %v22
  %v24 = vmul.f32 %v18, %v23
  %v25 = vlaneseq
  %v26 = vshrl.u32 %v25, 7
  %v27 = vsub.s32 4, %v26
  %v28 = vrot.slane %v14, %v27
  %v29 = vadd.f32 %v28, %v24
  %30 = vset.pattern.permute.xlu0 1
  %31 = vperm.xlu0 %30, %v13
  %v32 = vpop.permute.xlu0 %31
  %v34 = vlaneseq
  %v35 = vshrl.u32 %v34, 7
  %v36 = vsub.s32 1, %v35
  %v37 = vrot.slane %v14, %v36
  %v38 = vmul.f32 %v32, %v37
  %v39 = vadd.f32 %v29, %v38
  %40 = vset.pattern.permute.xlu0 2
  %41 = vperm.xlu0 %40, %v13
  %v42 = vpop.permute.xlu0 %41
  %v44 = vlaneseq
  %v45 = vshrl.u32 %v44, 7
  %v46 = vsub.s32 2, %v45
  %v47 = vrot.slane %v14, %v46
  %v48 = vmul.f32 %v42, %v47
  %v49 = vadd.f32 %v39, %v48
  %50 = vset.pattern.permute.xlu0 3
  %51 = vperm.xlu0 %50, %v13
  %v52 = vpop.permute.xlu0 %51
  %v54 = vlaneseq
  %v55 = vshrl.u32 %v54, 7
  %v56 = vsub.s32 3, %v55
  %v57 = vrot.slane %v14, %v56
  %v58 = vmul.f32 %v52, %v57
  %v59 = vadd.f32 %v49, %v58
  %v60 = vmax.f32 %v59, 0.0
  %v61 = vlaneseq
  %v62 = vshrl.u32 %v61, 7
  %v63 = vsub.s32 5, %v62
  %v64 = vrot.slane %v14, %v63
  %v65 = vmul.f32 %v60, %v64
  %66 = vadd.xlane.f32.xlu0 %v65
  %v67 = vpop.xlane.xlu0 %66
  %v68 = vlaneseq
  %v69 = vshrl.u32 %v68, 7
  %v70 = vsub.s32 7, %v69
  %v71 = vrot.slane %v14, %v70
  %v72 = vadd.f32 %v67, %v71
  %v73 = vlaneseq
  %v74 = vshrl.u32 %v73, 7
  %v75 = vsub.s32 6, %v74
  %v76 = vrot.slane %v14, %v75
  %v77 = vmul.f32 %v60, %v76
  %78 = vadd.xlane.f32.xlu0 %v77
  %v79 = vpop.xlane.xlu0 %78
  %v80 = vadd.f32 %v79, %v71
  %v81 = vxor.u32 %v72, 2147483648
  %v82 = vmul.f32 %v81, 1.442695
  %v83 = vpow.pop %v82
  %v84 = vadd.f32 %v83, 1.0
  %v85 = vrcp.pop %v84
  %v86 = vmul.f32 1.0, %v85
  %v87 = vsub.f32 1.0, %v86
  %vm88 = vcmask 7168
  %89 = vst.msk [vmem:[%s2] sm:$0xff] %vm88, %v87
  %91 = vrot.lane.b32.xlu0 %v86, 1
  %v92 = vpop.permute.xlu0 %91
  %vm94 = vcmask 15368
  %95 = vst.msk [vmem:[%s2] sm:$0xff] %vm94, %v92
  %97 = vrot.lane.b32.xlu0 %v80, 127
  %v98 = vpop.permute.xlu0 %97
  %100 = vst.msk [vmem:[%s3] sm:$0xff] %vm88, %v98
  // Predicated region
  $region10: #{tpu_custom_call.1} parent=0 // pred_check
    _
  $region11: #{tpu_custom_call.1} parent=0 // pred_check_branch
    %102 = sbr.rel (0) target = $region13
  $region12: #{tpu_custom_call.1} parent=0 // pred_region
    _
  $region13: #{tpu_custom_call.1} parent=0 // pred_fallthru
    _
  // Predicated region
  $region14: #{tpu_custom_call.1} parent=0 // pred_check
    _
  $region15: #{tpu_custom_call.1} parent=0 // pred_check_branch
    %104 = sbr.rel (0) target = $region17
  $region16: #{tpu_custom_call.1} parent=0 // pred_region
    _
  $region17: #{tpu_custom_call.1} parent=0 // pred_fallthru
    _
  // Predicated region
  $region18: #{tpu_custom_call.1} parent=0 // pred_check
    _
  $region19: #{tpu_custom_call.1} parent=0 // pred_check_branch
    %106 = sbr.rel (0) target = $region21
  $region20: #{tpu_custom_call.1} parent=0 // pred_region
    _
  $region21: #{tpu_custom_call.1} parent=0 // pred_fallthru
    _
  // Predicated region
  $region22: #{tpu_custom_call.1} parent=0 // pred_check
    _
  $region23: #{tpu_custom_call.1} parent=0 // pred_check_branch
    %108 = sbr.rel (0) target = $region25
  $region24: #{tpu_custom_call.1} parent=0 // pred_region
    _
  $region25: #{tpu_custom_call.1} parent=0 // pred_fallthru
    _

</llo_original>
